<compile_context>
chip_gen: v7x
topology: tpu7x:2x2x1
jax: 0.10.0
libtpu: 0.0.40
codegen_flags: <defaults>
</compile_context>

<pallas_src>
import functools
import math

import jax
import jax.numpy as jnp
from jax.experimental import pallas as pl
from jax.experimental.pallas import tpu as pltpu

NEG_SLOPE = 0.01  # PyTorch F.leaky_relu default negative_slope


# --------------------------------------------------------------------------
# Fused EPiC-layer kernel (one grid step == one point cloud / batch element)
# --------------------------------------------------------------------------
def _epic_layer_kernel(xg_ref, xl_ref, wg1_ref, bg1_ref, wg2_ref, bg2_ref,
                       wl1_ref, bl1_ref, wl2_ref, bl2_ref, *rest,
                       hid, n_points, sum_scale, has_mask, mm_dtype):
    if has_mask:
        m_ref, xg_out_ref, xl_out_ref = rest
    else:
        xg_out_ref, xl_out_ref = rest

    def lrelu(v):
        return jnp.where(v > 0, v, NEG_SLOPE * v)

    def mm(a, w):
        # bf16 (v6e/v7x) or f32 operands; accumulate in f32 either way.
        return jnp.dot(a.astype(mm_dtype), w, preferred_element_type=jnp.float32)

    xl = xl_ref[0].astype(jnp.float32)     # (N, H)   local features (VMEM-resident)
    xg = xg_ref[0].astype(jnp.float32)     # (1, L)   global features

    # --- masked sum / mean pooling over points (fused epilogue, no HBM trip) ---
    if has_mask:
        m = m_ref[0].astype(jnp.float32)                      # (N, 1)
        s = jnp.sum(xl * m, axis=0, keepdims=True)            # (1, H)
        cnt = jnp.maximum(jnp.sum(m, axis=0, keepdims=True), 1.0)
        mean = s / cnt
    else:
        s = jnp.sum(xl, axis=0, keepdims=True)                # (1, H)
        mean = s * (1.0 / n_points)
    ssum = s * sum_scale

    # --- global path: split-K dots replace concat([mean, sum, x_global]) ---
    wg1 = wg1_ref[...]                                        # (2H+L, H)
    g1 = lrelu(mm(mean, wg1[:hid, :])
               + mm(ssum, wg1[hid:2 * hid, :])
               + mm(xg, wg1[2 * hid:, :])
               + bg1_ref[...])
    xg_new = lrelu(mm(g1, wg2_ref[...]) + bg2_ref[...] + xg)  # residual + act
    xg_out_ref[0] = xg_new.astype(xg_out_ref.dtype)

    # --- local path: split-K dots replace concat([x_local, broadcast(x_global)])
    wl1 = wl1_ref[...]                                        # (H+L, H)
    loc = mm(xl, wl1[:hid, :])                                # (N, H)
    glo = mm(xg_new, wl1[hid:, :])                            # (1, H) broadcast over points
    l1 = lrelu(loc + glo + bl1_ref[...])
    xl_new = lrelu(mm(l1, wl2_ref[...]) + bl2_ref[...] + xl)  # residual + act
    xl_out_ref[0] = xl_new.astype(xl_out_ref.dtype)


# --------------------------------------------------------------------------
# Wrapper
# --------------------------------------------------------------------------
def epic_layer_forward(params, x_global, x_local, mask=None, *,
                       sum_scale=0.01, use_bf16=False):
    """x_global: (B, L), x_local: (B, N, H), optional mask: (B, N, 1)."""
    B, N, H = x_local.shape
    L = x_global.shape[-1]
    assert params["l2"]["w"].shape == (H, H), "fc_local2 residual needs local_in_dim == hid_dim"

    w_dtype = jnp.bfloat16 if use_bf16 else jnp.float32

    xg3 = x_global.reshape(B, 1, L).astype(jnp.float32)
    xl3 = x_local.astype(jnp.float32)

    def wb(name):
        w = params[name]["w"].astype(w_dtype)
        b = params[name]["b"].reshape(1, -1).astype(jnp.float32)
        return w, b

    wg1, bg1 = wb("g1")
    wg2, bg2 = wb("g2")
    wl1, bl1 = wb("l1")
    wl2, bl2 = wb("l2")

    args = [xg3, xl3, wg1, bg1, wg2, bg2, wl1, bl1, wl2, bl2]
    in_specs = [
        pl.BlockSpec((1, 1, L), lambda i: (i, 0, 0)),
        pl.BlockSpec((1, N, H), lambda i: (i, 0, 0)),
        pl.BlockSpec(wg1.shape, lambda i: (0, 0)),
        pl.BlockSpec(bg1.shape, lambda i: (0, 0)),
        pl.BlockSpec(wg2.shape, lambda i: (0, 0)),
        pl.BlockSpec(bg2.shape, lambda i: (0, 0)),
        pl.BlockSpec(wl1.shape, lambda i: (0, 0)),
        pl.BlockSpec(bl1.shape, lambda i: (0, 0)),
        pl.BlockSpec(wl2.shape, lambda i: (0, 0)),
        pl.BlockSpec(bl2.shape, lambda i: (0, 0)),
    ]
    has_mask = mask is not None
    if has_mask:
        args.append(mask.reshape(B, N, 1).astype(jnp.float32))
        in_specs.append(pl.BlockSpec((1, N, 1), lambda i: (i, 0, 0)))

    kernel = functools.partial(
        _epic_layer_kernel, hid=H, n_points=N, sum_scale=float(sum_scale),
        has_mask=has_mask, mm_dtype=w_dtype)

    xg_out, xl_out = pl.pallas_call(
        kernel,
        grid=(B,),
        in_specs=in_specs,
        out_specs=(
            pl.BlockSpec((1, 1, L), lambda i: (i, 0, 0)),
            pl.BlockSpec((1, N, H), lambda i: (i, 0, 0)),
        ),
        out_shape=(
            jax.ShapeDtypeStruct((B, 1, L), jnp.float32),
            jax.ShapeDtypeStruct((B, N, H), jnp.float32),
        ),
        compiler_params=pltpu.CompilerParams(dimension_semantics=("parallel",)),
    )(*args)
    return xg_out.reshape(B, L), xl_out


# --------------------------------------------------------------------------
# Pure-JAX reference (mirror of the PyTorch forward, default flags)
# --------------------------------------------------------------------------
def epic_layer_ref(params, x_global, x_local, mask=None, sum_scale=0.01):
    if mask is None:
        mask = jnp.ones(x_local.shape[:-1] + (1,), x_local.dtype)
    lrelu = lambda v: jnp.where(v > 0, v, NEG_SLOPE * v)
    s = jnp.sum(x_local * mask, axis=-2)
    mean = s / jnp.maximum(jnp.sum(mask, axis=-2), 1.0)
    ss = s * sum_scale
    g_in = jnp.concatenate([mean, ss, x_global], axis=-1)
    g1 = lrelu(g_in @ params["g1"]["w"] + params["g1"]["b"])
    xg = lrelu(g1 @ params["g2"]["w"] + params["g2"]["b"] + x_global)
    g2l = jnp.broadcast_to(xg[..., None, :], x_local.shape[:-1] + (xg.shape[-1],))
    l_in = jnp.concatenate([x_local, g2l], axis=-1)
    l1 = lrelu(l_in @ params["l1"]["w"] + params["l1"]["b"])
    xl = lrelu(l1 @ params["l2"]["w"] + params["l2"]["b"] + x_local)
    return xg, xl


# --------------------------------------------------------------------------
# Parameter init (mimics nn.Linear default uniform(+-1/sqrt(fan_in)))
# --------------------------------------------------------------------------
def init_linear(key, in_dim, out_dim):
    bound = 1.0 / math.sqrt(in_dim)
    kw, kb = jax.random.split(key)
    return {
        "w": jax.random.uniform(kw, (in_dim, out_dim), jnp.float32, -bound, bound),
        "b": jax.random.uniform(kb, (out_dim,), jnp.float32, -bound, bound),
    }


def init_epic_layer(key, hid, latent):
    k = jax.random.split(key, 4)
    return {
        "g1": init_linear(k[0], 2 * hid + latent, hid),   # fc_global1
        "g2": init_linear(k[1], hid, latent),             # fc_global2
        "l1": init_linear(k[2], hid + latent, hid),       # fc_local1
        "l2": init_linear(k[3], hid, hid),                # fc_local2
    }


# --------------------------------------------------------------------------
# Main
# --------------------------------------------------------------------------
if __name__ == "__main__":
    B = 4            # batch
    N = 30           # num_points (module default)
    HID = 32         # hid_dim == local_in_dim (required by fc_local2 residual)
    LATENT = 16      # latent_dim (module default)
    SUM_SCALE = 0.01

    key = jax.random.PRNGKey(0)
    kp, kg, kl, km = jax.random.split(key, 4)
    params = init_epic_layer(kp, HID, LATENT)
    x_global = jax.random.normal(kg, (B, LATENT), jnp.float32)
    x_local = jax.random.normal(kl, (B, N, HID), jnp.float32)

    # f32 path (default mask=None, matches the reference forward exactly)
    fwd = jax.jit(functools.partial(epic_layer_forward, sum_scale=SUM_SCALE))
    xg, xl = fwd(params, x_global, x_local)
    jax.block_until_ready((xg, xl))
    assert xg.shape == (B, LATENT) and xl.shape == (B, N, HID)

    xg_r, xl_r = epic_layer_ref(params, x_global, x_local, sum_scale=SUM_SCALE)
    assert jnp.all(jnp.isfinite(xg)) and jnp.all(jnp.isfinite(xl))
    assert jnp.allclose(xg, xg_r, atol=2e-2, rtol=2e-2)
    assert jnp.allclose(xl, xl_r, atol=2e-2, rtol=2e-2)

    # masked + bf16-MXU-operand path (v6e/v7x-friendly); relaxed tolerance
    mask = (jax.random.uniform(km, (B, N, 1)) > 0.2).astype(jnp.float32)
    fwd_bf16 = jax.jit(functools.partial(epic_layer_forward,
                                         sum_scale=SUM_SCALE, use_bf16=True))
    xg2, xl2 = fwd_bf16(params, x_global, x_local, mask)
    jax.block_until_ready((xg2, xl2))
    xg2_r, xl2_r = epic_layer_ref(params, x_global, x_local, mask, sum_scale=SUM_SCALE)
    assert jnp.all(jnp.isfinite(xg2)) and jnp.all(jnp.isfinite(xl2))
    assert jnp.allclose(xg2, xg2_r, atol=1e-1, rtol=1e-1)
    assert jnp.allclose(xl2, xl2_r, atol=1e-1, rtol=1e-1)

    print("KERNEL_OK")
</pallas_src>

<mosaic_0001>
module attributes {stable_mosaic.version = 11 : i64} {
  func.func @_epic_layer_kernel(%arg0: i32, %arg1: memref<1x1x16xf32, #tpu.memory_space<vmem>>, %arg2: memref<1x30x32xf32, #tpu.memory_space<vmem>>, %arg3: memref<80x32xf32, #tpu.memory_space<vmem>>, %arg4: memref<1x32xf32, #tpu.memory_space<vmem>>, %arg5: memref<32x16xf32, #tpu.memory_space<vmem>>, %arg6: memref<1x16xf32, #tpu.memory_space<vmem>>, %arg7: memref<48x32xf32, #tpu.memory_space<vmem>>, %arg8: memref<1x32xf32, #tpu.memory_space<vmem>>, %arg9: memref<32x32xf32, #tpu.memory_space<vmem>>, %arg10: memref<1x32xf32, #tpu.memory_space<vmem>>, %arg11: memref<1x1x16xf32, #tpu.memory_space<vmem>>, %arg12: memref<1x30x32xf32, #tpu.memory_space<vmem>>) attributes {dimension_semantics = [#tpu.dimension_semantics<parallel>], iteration_bounds = array<i64: 4>, scalar_prefetch = 0 : i64, scratch_operands = 0 : i64, tpu.core_type = #tpu.core_type<tc>, window_params = [{transform_indices = @transform_0, window_bounds = array<i64: 1, 1, 16>}, {transform_indices = @transform_1, window_bounds = array<i64: 1, 30, 32>}, {pipeline_mode = #tpu.pipeline_mode<synchronous>, transform_indices = @transform_2, window_bounds = array<i64: 80, 32>}, {pipeline_mode = #tpu.pipeline_mode<synchronous>, transform_indices = @transform_3, window_bounds = array<i64: 1, 32>}, {pipeline_mode = #tpu.pipeline_mode<synchronous>, transform_indices = @transform_4, window_bounds = array<i64: 32, 16>}, {pipeline_mode = #tpu.pipeline_mode<synchronous>, transform_indices = @transform_5, window_bounds = array<i64: 1, 16>}, {pipeline_mode = #tpu.pipeline_mode<synchronous>, transform_indices = @transform_6, window_bounds = array<i64: 48, 32>}, {pipeline_mode = #tpu.pipeline_mode<synchronous>, transform_indices = @transform_7, window_bounds = array<i64: 1, 32>}, {pipeline_mode = #tpu.pipeline_mode<synchronous>, transform_indices = @transform_8, window_bounds = array<i64: 32, 32>}, {pipeline_mode = #tpu.pipeline_mode<synchronous>, transform_indices = @transform_9, window_bounds = array<i64: 1, 32>}, {transform_indices = @transform_10, window_bounds = array<i64: 1, 1, 16>}, {transform_indices = @transform_11, window_bounds = array<i64: 1, 30, 32>}]} {
    %c0 = arith.constant 0 : index
    %c0_0 = arith.constant 0 : index
    %c0_1 = arith.constant 0 : index
    %0 = vector.load %arg2[%c0, %c0_0, %c0_1] : memref<1x30x32xf32, #tpu.memory_space<vmem>>, vector<1x30x32xf32>
    %1 = vector.shape_cast %0 : vector<1x30x32xf32> to vector<30x32xf32>
    %c0_2 = arith.constant 0 : index
    %c0_3 = arith.constant 0 : index
    %c0_4 = arith.constant 0 : index
    %2 = vector.load %arg1[%c0_2, %c0_3, %c0_4] : memref<1x1x16xf32, #tpu.memory_space<vmem>>, vector<1x1x16xf32>
    %3 = vector.shape_cast %2 : vector<1x1x16xf32> to vector<1x16xf32>
    %cst = arith.constant dense<0.000000e+00> : vector<32xf32>
    %4 = vector.multi_reduction <add>, %1, %cst [0] : vector<30x32xf32> to vector<32xf32>
    %5 = vector.shape_cast %4 : vector<32xf32> to vector<1x32xf32>
    %cst_5 = arith.constant 0.0333333351 : f32
    %6 = vector.broadcast %cst_5 : f32 to vector<1x32xf32>
    %7 = arith.mulf %5, %6 : vector<1x32xf32>
    %cst_6 = arith.constant 0.00999999977 : f32
    %8 = vector.broadcast %cst_6 : f32 to vector<1x32xf32>
    %9 = arith.mulf %5, %8 : vector<1x32xf32>
    %c0_7 = arith.constant 0 : index
    %c0_8 = arith.constant 0 : index
    %10 = vector.load %arg3[%c0_7, %c0_8] : memref<80x32xf32, #tpu.memory_space<vmem>>, vector<80x32xf32>
    %11 = vector.extract_strided_slice %10 {offsets = [0, 0], sizes = [32, 32], strides = [1, 1]} : vector<80x32xf32> to vector<32x32xf32>
    %cst_9 = arith.constant dense<0.000000e+00> : vector<1x32xf32>
    %12 = tpu.matmul %7, %11, %cst_9 {dimension_numbers = #tpu.dot_dimension_numbers<[1], [0], [0], [1], [0, 0, 1, 1], [], []>} : vector<1x32xf32>, vector<32x32xf32>, vector<1x32xf32> -> vector<1x32xf32>
    %13 = vector.extract_strided_slice %10 {offsets = [32, 0], sizes = [32, 32], strides = [1, 1]} : vector<80x32xf32> to vector<32x32xf32>
    %cst_10 = arith.constant dense<0.000000e+00> : vector<1x32xf32>
    %14 = tpu.matmul %9, %13, %cst_10 {dimension_numbers = #tpu.dot_dimension_numbers<[1], [0], [0], [1], [0, 0, 1, 1], [], []>} : vector<1x32xf32>, vector<32x32xf32>, vector<1x32xf32> -> vector<1x32xf32>
    %15 = arith.addf %12, %14 : vector<1x32xf32>
    %16 = vector.extract_strided_slice %10 {offsets = [64, 0], sizes = [16, 32], strides = [1, 1]} : vector<80x32xf32> to vector<16x32xf32>
    %cst_11 = arith.constant dense<0.000000e+00> : vector<1x32xf32>
    %17 = tpu.matmul %3, %16, %cst_11 {dimension_numbers = #tpu.dot_dimension_numbers<[1], [0], [0], [1], [0, 0, 1, 1], [], []>} : vector<1x16xf32>, vector<16x32xf32>, vector<1x32xf32> -> vector<1x32xf32>
    %18 = arith.addf %15, %17 : vector<1x32xf32>
    %c0_12 = arith.constant 0 : index
    %c0_13 = arith.constant 0 : index
    %19 = vector.load %arg4[%c0_12, %c0_13] : memref<1x32xf32, #tpu.memory_space<vmem>>, vector<1x32xf32>
    %20 = arith.addf %18, %19 : vector<1x32xf32>
    %cst_14 = arith.constant 0.000000e+00 : f32
    %21 = vector.broadcast %cst_14 : f32 to vector<1x32xf32>
    %22 = arith.cmpf ogt, %20, %21 : vector<1x32xf32>
    %cst_15 = arith.constant 0.00999999977 : f32
    %23 = vector.broadcast %cst_15 : f32 to vector<1x32xf32>
    %24 = arith.mulf %23, %20 : vector<1x32xf32>
    %25 = arith.select %22, %20, %24 : vector<1x32xi1>, vector<1x32xf32>
    %c0_16 = arith.constant 0 : index
    %c0_17 = arith.constant 0 : index
    %26 = vector.load %arg5[%c0_16, %c0_17] : memref<32x16xf32, #tpu.memory_space<vmem>>, vector<32x16xf32>
    %cst_18 = arith.constant dense<0.000000e+00> : vector<1x16xf32>
    %27 = tpu.matmul %25, %26, %cst_18 {dimension_numbers = #tpu.dot_dimension_numbers<[1], [0], [0], [1], [0, 0, 1, 1], [], []>} : vector<1x32xf32>, vector<32x16xf32>, vector<1x16xf32> -> vector<1x16xf32>
    %c0_19 = arith.constant 0 : index
    %c0_20 = arith.constant 0 : index
    %28 = vector.load %arg6[%c0_19, %c0_20] : memref<1x16xf32, #tpu.memory_space<vmem>>, vector<1x16xf32>
    %29 = arith.addf %27, %28 : vector<1x16xf32>
    %30 = arith.addf %29, %3 : vector<1x16xf32>
    %cst_21 = arith.constant 0.000000e+00 : f32
    %31 = vector.broadcast %cst_21 : f32 to vector<1x16xf32>
    %32 = arith.cmpf ogt, %30, %31 : vector<1x16xf32>
    %cst_22 = arith.constant 0.00999999977 : f32
    %33 = vector.broadcast %cst_22 : f32 to vector<1x16xf32>
    %34 = arith.mulf %33, %30 : vector<1x16xf32>
    %35 = arith.select %32, %30, %34 : vector<1x16xi1>, vector<1x16xf32>
    %c0_23 = arith.constant 0 : index
    %c0_24 = arith.constant 0 : index
    %c0_25 = arith.constant 0 : index
    %36 = vector.load %arg11[%c0_23, %c0_24, %c0_25] : memref<1x1x16xf32, #tpu.memory_space<vmem>>, vector<1x1x16xf32>
    %37 = vector.shape_cast %36 : vector<1x1x16xf32> to vector<1x16xf32>
    %38 = vector.shape_cast %35 : vector<1x16xf32> to vector<1x1x16xf32>
    tpu.vector_store %arg11[%c0_23, %c0_24, %c0_25], %38 {strides = array<i32>} : memref<1x1x16xf32, #tpu.memory_space<vmem>>, vector<1x1x16xf32>,
    %c0_26 = arith.constant 0 : index
    %c0_27 = arith.constant 0 : index
    %39 = vector.load %arg7[%c0_26, %c0_27] : memref<48x32xf32, #tpu.memory_space<vmem>>, vector<48x32xf32>
    %40 = vector.extract_strided_slice %39 {offsets = [0, 0], sizes = [32, 32], strides = [1, 1]} : vector<48x32xf32> to vector<32x32xf32>
    %cst_28 = arith.constant dense<0.000000e+00> : vector<30x32xf32>
    %41 = tpu.matmul %1, %40, %cst_28 {dimension_numbers = #tpu.dot_dimension_numbers<[1], [0], [0], [1], [0, 0, 1, 1], [], []>} : vector<30x32xf32>, vector<32x32xf32>, vector<30x32xf32> -> vector<30x32xf32>
    %42 = vector.extract_strided_slice %39 {offsets = [32, 0], sizes = [16, 32], strides = [1, 1]} : vector<48x32xf32> to vector<16x32xf32>
    %cst_29 = arith.constant dense<0.000000e+00> : vector<1x32xf32>
    %43 = tpu.matmul %35, %42, %cst_29 {dimension_numbers = #tpu.dot_dimension_numbers<[1], [0], [0], [1], [0, 0, 1, 1], [], []>} : vector<1x16xf32>, vector<16x32xf32>, vector<1x32xf32> -> vector<1x32xf32>
    %44 = vector.broadcast %43 : vector<1x32xf32> to vector<30x32xf32>
    %45 = arith.addf %41, %44 : vector<30x32xf32>
    %c0_30 = arith.constant 0 : index
    %c0_31 = arith.constant 0 : index
    %46 = vector.load %arg8[%c0_30, %c0_31] : memref<1x32xf32, #tpu.memory_space<vmem>>, vector<1x32xf32>
    %47 = vector.broadcast %46 : vector<1x32xf32> to vector<30x32xf32>
    %48 = arith.addf %45, %47 : vector<30x32xf32>
    %cst_32 = arith.constant 0.000000e+00 : f32
    %49 = vector.broadcast %cst_32 : f32 to vector<30x32xf32>
    %50 = arith.cmpf ogt, %48, %49 : vector<30x32xf32>
    %cst_33 = arith.constant 0.00999999977 : f32
    %51 = vector.broadcast %cst_33 : f32 to vector<30x32xf32>
    %52 = arith.mulf %51, %48 : vector<30x32xf32>
    %53 = arith.select %50, %48, %52 : vector<30x32xi1>, vector<30x32xf32>
    %c0_34 = arith.constant 0 : index
    %c0_35 = arith.constant 0 : index
    %54 = vector.load %arg9[%c0_34, %c0_35] : memref<32x32xf32, #tpu.memory_space<vmem>>, vector<32x32xf32>
    %cst_36 = arith.constant dense<0.000000e+00> : vector<30x32xf32>
    %55 = tpu.matmul %53, %54, %cst_36 {dimension_numbers = #tpu.dot_dimension_numbers<[1], [0], [0], [1], [0, 0, 1, 1], [], []>} : vector<30x32xf32>, vector<32x32xf32>, vector<30x32xf32> -> vector<30x32xf32>
    %c0_37 = arith.constant 0 : index
    %c0_38 = arith.constant 0 : index
    %56 = vector.load %arg10[%c0_37, %c0_38] : memref<1x32xf32, #tpu.memory_space<vmem>>, vector<1x32xf32>
    %57 = vector.broadcast %56 : vector<1x32xf32> to vector<30x32xf32>
    %58 = arith.addf %55, %57 : vector<30x32xf32>
    %59 = arith.addf %58, %1 : vector<30x32xf32>
    %cst_39 = arith.constant 0.000000e+00 : f32
    %60 = vector.broadcast %cst_39 : f32 to vector<30x32xf32>
    %61 = arith.cmpf ogt, %59, %60 : vector<30x32xf32>
    %cst_40 = arith.constant 0.00999999977 : f32
    %62 = vector.broadcast %cst_40 : f32 to vector<30x32xf32>
    %63 = arith.mulf %62, %59 : vector<30x32xf32>
    %64 = arith.select %61, %59, %63 : vector<30x32xi1>, vector<30x32xf32>
    %c0_41 = arith.constant 0 : index
    %c0_42 = arith.constant 0 : index
    %c0_43 = arith.constant 0 : index
    %65 = vector.load %arg12[%c0_41, %c0_42, %c0_43] : memref<1x30x32xf32, #tpu.memory_space<vmem>>, vector<1x30x32xf32>
    %66 = vector.shape_cast %65 : vector<1x30x32xf32> to vector<30x32xf32>
    %67 = vector.shape_cast %64 : vector<30x32xf32> to vector<1x30x32xf32>
    tpu.vector_store %arg12[%c0_41, %c0_42, %c0_43], %67 {strides = array<i32>} : memref<1x30x32xf32, #tpu.memory_space<vmem>>, vector<1x30x32xf32>,
    return
  }
  func.func @transform_0(%arg0: i32) -> (i32, i32, i32) {
    %c0_i32 = arith.constant 0 : i32
    %c0_i32_0 = arith.constant 0 : i32
    %c0_i32_1 = arith.constant 0 : i32
    return %arg0, %c0_i32, %c0_i32_0 : i32, i32, i32
  }
  func.func @transform_1(%arg0: i32) -> (i32, i32, i32) {
    %c0_i32 = arith.constant 0 : i32
    %c0_i32_0 = arith.constant 0 : i32
    %c0_i32_1 = arith.constant 0 : i32
    return %arg0, %c0_i32, %c0_i32_0 : i32, i32, i32
  }
  func.func @transform_2(%arg0: i32) -> (i32, i32) {
    %c0_i32 = arith.constant 0 : i32
    %c0_i32_0 = arith.constant 0 : i32
    %c0_i32_1 = arith.constant 0 : i32
    return %c0_i32, %c0_i32_0 : i32, i32
  }
  func.func @transform_3(%arg0: i32) -> (i32, i32) {
    %c0_i32 = arith.constant 0 : i32
    %c0_i32_0 = arith.constant 0 : i32
    %c0_i32_1 = arith.constant 0 : i32
    return %c0_i32, %c0_i32_0 : i32, i32
  }
  func.func @transform_4(%arg0: i32) -> (i32, i32) {
    %c0_i32 = arith.constant 0 : i32
    %c0_i32_0 = arith.constant 0 : i32
    %c0_i32_1 = arith.constant 0 : i32
    return %c0_i32, %c0_i32_0 : i32, i32
  }
  func.func @transform_5(%arg0: i32) -> (i32, i32) {
    %c0_i32 = arith.constant 0 : i32
    %c0_i32_0 = arith.constant 0 : i32
    %c0_i32_1 = arith.constant 0 : i32
    return %c0_i32, %c0_i32_0 : i32, i32
  }
  func.func @transform_6(%arg0: i32) -> (i32, i32) {
    %c0_i32 = arith.constant 0 : i32
    %c0_i32_0 = arith.constant 0 : i32
    %c0_i32_1 = arith.constant 0 : i32
    return %c0_i32, %c0_i32_0 : i32, i32
  }
  func.func @transform_7(%arg0: i32) -> (i32, i32) {
    %c0_i32 = arith.constant 0 : i32
    %c0_i32_0 = arith.constant 0 : i32
    %c0_i32_1 = arith.constant 0 : i32
    return %c0_i32, %c0_i32_0 : i32, i32
  }
  func.func @transform_8(%arg0: i32) -> (i32, i32) {
    %c0_i32 = arith.constant 0 : i32
    %c0_i32_0 = arith.constant 0 : i32
    %c0_i32_1 = arith.constant 0 : i32
    return %c0_i32, %c0_i32_0 : i32, i32
  }
  func.func @transform_9(%arg0: i32) -> (i32, i32) {
    %c0_i32 = arith.constant 0 : i32
    %c0_i32_0 = arith.constant 0 : i32
    %c0_i32_1 = arith.constant 0 : i32
    return %c0_i32, %c0_i32_0 : i32, i32
  }
  func.func @transform_10(%arg0: i32) -> (i32, i32, i32) {
    %c0_i32 = arith.constant 0 : i32
    %c0_i32_0 = arith.constant 0 : i32
    %c0_i32_1 = arith.constant 0 : i32
    return %arg0, %c0_i32, %c0_i32_0 : i32, i32, i32
  }
  func.func @transform_11(%arg0: i32) -> (i32, i32, i32) {
    %c0_i32 = arith.constant 0 : i32
    %c0_i32_0 = arith.constant 0 : i32
    %c0_i32_1 = arith.constant 0 : i32
    return %arg0, %c0_i32, %c0_i32_0 : i32, i32, i32
  }
}

</mosaic_0001>

<llo_original>
// kernel: epic_layer_forward.1
$region0: #{epic_layer_forward.1}
  #allocation0 [shape = 'u32[]', space=smem, size = 0x4, offset = 0x4, fixed_abs, tag = 'smem constant byte address 0x4 - core index']
  #allocation1 [shape = 'u32[144,128]{1,0:T(1,128)}', space=vmem, size = 0x12000, scoped, tag = 'internal scratch']
  %s0 = inlined_call_operand.vmem [shape: f32[4,1,16], index: 0, kind: input, shape index: {}]
  %s1 = inlined_call_operand.vmem [shape: f32[4,30,32], index: 1, kind: input, shape index: {}]
  %s2 = inlined_call_operand.vmem [shape: f32[80,32], index: 2, kind: input, shape index: {}]
  %s3 = inlined_call_operand.vmem [shape: f32[1,32], index: 3, kind: input, shape index: {}]
  %s4 = inlined_call_operand.vmem [shape: f32[32,16], index: 4, kind: input, shape index: {}]
  %s5 = inlined_call_operand.vmem [shape: f32[1,16], index: 5, kind: input, shape index: {}]
  %s6 = inlined_call_operand.vmem [shape: f32[48,32], index: 6, kind: input, shape index: {}]
  %s7 = inlined_call_operand.vmem [shape: f32[1,32], index: 7, kind: input, shape index: {}]
  %s8 = inlined_call_operand.vmem [shape: f32[32,32], index: 8, kind: input, shape index: {}]
  %s9 = inlined_call_operand.vmem [shape: f32[1,32], index: 9, kind: input, shape index: {}]
  %s10 = inlined_call_operand.hbm [shape: f32[4,1,16], index: 10, kind: output, shape index: {0}]
  %s11 = inlined_call_operand.vmem [shape: f32[4,30,32], index: 11, kind: output, shape index: {1}]
  %12 = xla_tuple %s10, %s11
  %s13 = sld [smem:[#allocation0]]
  $region81: #{epic_layer_forward.1} parent=0
    _
  %s15 = ssub.s32 1, %s13
  %s16 = scalar_select 0, %s15, %s13
  $region1: #{epic_layer_forward.1} parent=0
    #allocation2 [shape = 'u8[1024]{0}', space=vmem, size = 0x400, scoped, tag = 'output window, operand 0']
    #allocation3 [shape = 's32[2]{0}', space=sflag, size = 0x8, scoped, tag = 'scoped memory for epic_layer_forward.1']
    %17 = vsyncpa [#allocation3], 0
    %s18 = scalar_lea.sflag [#allocation3], 1
    %19 = vsyncpa %s18, 0
    loop: start=0, step=1, limit=6
    $region2: #{epic_layer_forward.1} parent=1 // loop_pre_header
      _
    $region3: #{epic_layer_forward.1} parent=1 // loop_header
      %s21 = sphi 0, %s25
      %p22 = scmp.ge.s32.totalorder %s21, 6
      %s31 = sphi 0, %s33
      %s34 = sphi 0, %s31
      %s35 = sphi 0, %s34
      %s51 = sphi 0, %s35
      %s57 = sphi 0, %s59
      %s60 = sphi 0, %s57
      %s61 = sphi 0, %s60
      %s77 = sphi 0, %s61
      %s81 = sphi 0, %s81
      %s83 = sphi 0, %s81
      %s84 = sphi 0, %s83
      %s98 = sphi 0, %s84
      %s102 = sphi 0, %s102
      %s104 = sphi 0, %s102
      %s105 = sphi 0, %s104
      %s119 = sphi 0, %s105
      %s123 = sphi 0, %s123
      %s125 = sphi 0, %s123
      %s126 = sphi 0, %s125
      %s140 = sphi 0, %s126
      %s144 = sphi 0, %s144
      %s146 = sphi 0, %s144
      %s147 = sphi 0, %s146
      %s161 = sphi 0, %s147
      %s165 = sphi 0, %s165
      %s167 = sphi 0, %s165
      %s168 = sphi 0, %s167
      %s182 = sphi 0, %s168
      %s186 = sphi 0, %s186
      %s188 = sphi 0, %s186
      %s189 = sphi 0, %s188
      %s203 = sphi 0, %s189
      %s207 = sphi 0, %s207
      %s209 = sphi 0, %s207
      %s210 = sphi 0, %s209
      %s224 = sphi 0, %s210
      %s228 = sphi 0, %s228
      %s230 = sphi 0, %s228
      %s231 = sphi 0, %s230
      %s245 = sphi 0, %s231
      %s251 = sphi 0, %s253
      %s254 = sphi 0, %s251
      %s255 = sphi 0, %s254
      %s271 = sphi 0, %s255
      %s277 = sphi 0, %s279
      %s280 = sphi 0, %s277
      %s281 = sphi 0, %s280
      %s297 = sphi 0, %s281
    $region4: #{epic_layer_forward.1} parent=1 // loop_header_branch
      %24 = sbr.rel (%p22) target = $region8
    $region5: #{epic_layer_forward.1} parent=1 // loop_body
      %s26 = ssub.s32 %s21, 1
      %s27 = ssub.s32 %s21, 2
      %s28 = sadd.s32 %s21, 1
      %s29 = ssub.s32 %s21, %s28
      %p30 = scmp.eq.s32.totalorder %s29, 0
      %s32 = sadd.s32 %s31, 1
      %s33 = scalar_select %p30, %s31, %s32
      %p36 = pneg %p30
      %p37 = scmp.eq.s32.totalorder %s21, 3
      %p38 = por %p36, %p37
      %p39 = scmp.ne.s32.totalorder %s31, %s34
      %p40 = scmp.eq.s32.totalorder %s21, 0
      %p41 = por %p39, %p40
      %p42 = scmp.ne.s32.totalorder %s31, %s34
      %p43 = scmp.eq.s32.totalorder %s26, 3
      %p44 = por %p42, %p43
      %p45 = scmp.ne.s32.totalorder %s34, %s35
      %p46 = scmp.eq.s32.totalorder %s26, 0
      %p47 = por %p45, %p46
      %p48 = scmp.ne.s32.totalorder %s34, %s35
      %p49 = scmp.eq.s32.totalorder %s27, 3
      %p50 = por %p48, %p49
      %p52 = scmp.ne.s32.totalorder %s35, %s51
      %p53 = scmp.eq.s32.totalorder %s27, 0
      %p54 = por %p52, %p53
      %s55 = ssub.s32 %s21, %s28
      %p56 = scmp.eq.s32.totalorder %s55, 0
      %s58 = sadd.s32 %s57, 1
      %s59 = scalar_select %p56, %s57, %s58
      %p62 = pneg %p56
      %p63 = scmp.eq.s32.totalorder %s21, 3
      %p64 = por %p62, %p63
      %p65 = scmp.ne.s32.totalorder %s57, %s60
      %p66 = scmp.eq.s32.totalorder %s21, 0
      %p67 = por %p65, %p66
      %p68 = scmp.ne.s32.totalorder %s57, %s60
      %p69 = scmp.eq.s32.totalorder %s26, 3
      %p70 = por %p68, %p69
      %p71 = scmp.ne.s32.totalorder %s60, %s61
      %p72 = scmp.eq.s32.totalorder %s26, 0
      %p73 = por %p71, %p72
      %p74 = scmp.ne.s32.totalorder %s60, %s61
      %p75 = scmp.eq.s32.totalorder %s27, 3
      %p76 = por %p74, %p75
      %p78 = scmp.ne.s32.totalorder %s61, %s77
      %p79 = scmp.eq.s32.totalorder %s27, 0
      %p80 = por %p78, %p79
      %s82 = sadd.s32 %s81, 1
      %p85 = scmp.eq.s32.totalorder %s21, 3
      %p86 = scmp.ne.s32.totalorder %s81, %s83
      %p87 = scmp.eq.s32.totalorder %s21, 0
      %p88 = por %p86, %p87
      %p89 = scmp.ne.s32.totalorder %s81, %s83
      %p90 = scmp.eq.s32.totalorder %s26, 3
      %p91 = por %p89, %p90
      %p92 = scmp.ne.s32.totalorder %s83, %s84
      %p93 = scmp.eq.s32.totalorder %s26, 0
      %p94 = por %p92, %p93
      %p95 = scmp.ne.s32.totalorder %s83, %s84
      %p96 = scmp.eq.s32.totalorder %s27, 3
      %p97 = por %p95, %p96
      %p99 = scmp.ne.s32.totalorder %s84, %s98
      %p100 = scmp.eq.s32.totalorder %s27, 0
      %p101 = por %p99, %p100
      %s103 = sadd.s32 %s102, 1
      %p106 = scmp.eq.s32.totalorder %s21, 3
      %p107 = scmp.ne.s32.totalorder %s102, %s104
      %p108 = scmp.eq.s32.totalorder %s21, 0
      %p109 = por %p107, %p108
      %p110 = scmp.ne.s32.totalorder %s102, %s104
      %p111 = scmp.eq.s32.totalorder %s26, 3
      %p112 = por %p110, %p111
      %p113 = scmp.ne.s32.totalorder %s104, %s105
      %p114 = scmp.eq.s32.totalorder %s26, 0
      %p115 = por %p113, %p114
      %p116 = scmp.ne.s32.totalorder %s104, %s105
      %p117 = scmp.eq.s32.totalorder %s27, 3
      %p118 = por %p116, %p117
      %p120 = scmp.ne.s32.totalorder %s105, %s119
      %p121 = scmp.eq.s32.totalorder %s27, 0
      %p122 = por %p120, %p121
      %s124 = sadd.s32 %s123, 1
      %p127 = scmp.eq.s32.totalorder %s21, 3
      %p128 = scmp.ne.s32.totalorder %s123, %s125
      %p129 = scmp.eq.s32.totalorder %s21, 0
      %p130 = por %p128, %p129
      %p131 = scmp.ne.s32.totalorder %s123, %s125
      %p132 = scmp.eq.s32.totalorder %s26, 3
      %p133 = por %p131, %p132
      %p134 = scmp.ne.s32.totalorder %s125, %s126
      %p135 = scmp.eq.s32.totalorder %s26, 0
      %p136 = por %p134, %p135
      %p137 = scmp.ne.s32.totalorder %s125, %s126
      %p138 = scmp.eq.s32.totalorder %s27, 3
      %p139 = por %p137, %p138
      %p141 = scmp.ne.s32.totalorder %s126, %s140
      %p142 = scmp.eq.s32.totalorder %s27, 0
      %p143 = por %p141, %p142
      %s145 = sadd.s32 %s144, 1
      %p148 = scmp.eq.s32.totalorder %s21, 3
      %p149 = scmp.ne.s32.totalorder %s144, %s146
      %p150 = scmp.eq.s32.totalorder %s21, 0
      %p151 = por %p149, %p150
      %p152 = scmp.ne.s32.totalorder %s144, %s146
      %p153 = scmp.eq.s32.totalorder %s26, 3
      %p154 = por %p152, %p153
      %p155 = scmp.ne.s32.totalorder %s146, %s147
      %p156 = scmp.eq.s32.totalorder %s26, 0
      %p157 = por %p155, %p156
      %p158 = scmp.ne.s32.totalorder %s146, %s147
      %p159 = scmp.eq.s32.totalorder %s27, 3
      %p160 = por %p158, %p159
      %p162 = scmp.ne.s32.totalorder %s147, %s161
      %p163 = scmp.eq.s32.totalorder %s27, 0
      %p164 = por %p162, %p163
      %s166 = sadd.s32 %s165, 1
      %p169 = scmp.eq.s32.totalorder %s21, 3
      %p170 = scmp.ne.s32.totalorder %s165, %s167
      %p171 = scmp.eq.s32.totalorder %s21, 0
      %p172 = por %p170, %p171
      %p173 = scmp.ne.s32.totalorder %s165, %s167
      %p174 = scmp.eq.s32.totalorder %s26, 3
      %p175 = por %p173, %p174
      %p176 = scmp.ne.s32.totalorder %s167, %s168
      %p177 = scmp.eq.s32.totalorder %s26, 0
      %p178 = por %p176, %p177
      %p179 = scmp.ne.s32.totalorder %s167, %s168
      %p180 = scmp.eq.s32.totalorder %s27, 3
      %p181 = por %p179, %p180
      %p183 = scmp.ne.s32.totalorder %s168, %s182
      %p184 = scmp.eq.s32.totalorder %s27, 0
      %p185 = por %p183, %p184
      %s187 = sadd.s32 %s186, 1
      %p190 = scmp.eq.s32.totalorder %s21, 3
      %p191 = scmp.ne.s32.totalorder %s186, %s188
      %p192 = scmp.eq.s32.totalorder %s21, 0
      %p193 = por %p191, %p192
      %p194 = scmp.ne.s32.totalorder %s186, %s188
      %p195 = scmp.eq.s32.totalorder %s26, 3
      %p196 = por %p194, %p195
      %p197 = scmp.ne.s32.totalorder %s188, %s189
      %p198 = scmp.eq.s32.totalorder %s26, 0
      %p199 = por %p197, %p198
      %p200 = scmp.ne.s32.totalorder %s188, %s189
      %p201 = scmp.eq.s32.totalorder %s27, 3
      %p202 = por %p200, %p201
      %p204 = scmp.ne.s32.totalorder %s189, %s203
      %p205 = scmp.eq.s32.totalorder %s27, 0
      %p206 = por %p204, %p205
      %s208 = sadd.s32 %s207, 1
      %p211 = scmp.eq.s32.totalorder %s21, 3
      %p212 = scmp.ne.s32.totalorder %s207, %s209
      %p213 = scmp.eq.s32.totalorder %s21, 0
      %p214 = por %p212, %p213
      %p215 = scmp.ne.s32.totalorder %s207, %s209
      %p216 = scmp.eq.s32.totalorder %s26, 3
      %p217 = por %p215, %p216
      %p218 = scmp.ne.s32.totalorder %s209, %s210
      %p219 = scmp.eq.s32.totalorder %s26, 0
      %p220 = por %p218, %p219
      %p221 = scmp.ne.s32.totalorder %s209, %s210
      %p222 = scmp.eq.s32.totalorder %s27, 3
      %p223 = por %p221, %p222
      %p225 = scmp.ne.s32.totalorder %s210, %s224
      %p226 = scmp.eq.s32.totalorder %s27, 0
      %p227 = por %p225, %p226
      %s229 = sadd.s32 %s228, 1
      %p232 = scmp.eq.s32.totalorder %s21, 3
      %p233 = scmp.ne.s32.totalorder %s228, %s230
      %p234 = scmp.eq.s32.totalorder %s21, 0
      %p235 = por %p233, %p234
      %p236 = scmp.ne.s32.totalorder %s228, %s230
      %p237 = scmp.eq.s32.totalorder %s26, 3
      %p238 = por %p236, %p237
      %p239 = scmp.ne.s32.totalorder %s230, %s231
      %p240 = scmp.eq.s32.totalorder %s26, 0
      %p241 = por %p239, %p240
      %p242 = scmp.ne.s32.totalorder %s230, %s231
      %p243 = scmp.eq.s32.totalorder %s27, 3
      %p244 = por %p242, %p243
      %p246 = scmp.ne.s32.totalorder %s231, %s245
      %p247 = scmp.eq.s32.totalorder %s27, 0
      %p248 = por %p246, %p247
      %s249 = ssub.s32 %s21, %s28
      %p250 = scmp.eq.s32.totalorder %s249, 0
      %s252 = sadd.s32 %s251, 1
      %s253 = scalar_select %p250, %s251, %s252
      %p256 = pneg %p250
      %p257 = scmp.eq.s32.totalorder %s21, 3
      %p258 = por %p256, %p257
      %p259 = scmp.ne.s32.totalorder %s251, %s254
      %p260 = scmp.eq.s32.totalorder %s21, 0
      %p261 = por %p259, %p260
      %p262 = scmp.ne.s32.totalorder %s251, %s254
      %p263 = scmp.eq.s32.totalorder %s26, 3
      %p264 = por %p262, %p263
      %p265 = scmp.ne.s32.totalorder %s254, %s255
      %p266 = scmp.eq.s32.totalorder %s26, 0
      %p267 = por %p265, %p266
      %p268 = scmp.ne.s32.totalorder %s254, %s255
      %p269 = scmp.eq.s32.totalorder %s27, 3
      %p270 = por %p268, %p269
      %p272 = scmp.ne.s32.totalorder %s255, %s271
      %p273 = scmp.eq.s32.totalorder %s27, 0
      %p274 = por %p272, %p273
      %s275 = ssub.s32 %s21, %s28
      %p276 = scmp.eq.s32.totalorder %s275, 0
      %s278 = sadd.s32 %s277, 1
      %s279 = scalar_select %p276, %s277, %s278
      %p282 = pneg %p276
      %p283 = scmp.eq.s32.totalorder %s21, 3
      %p284 = por %p282, %p283
      %p285 = scmp.ne.s32.totalorder %s277, %s280
      %p286 = scmp.eq.s32.totalorder %s21, 0
      %p287 = por %p285, %p286
      %p288 = scmp.ne.s32.totalorder %s277, %s280
      %p289 = scmp.eq.s32.totalorder %s26, 3
      %p290 = por %p288, %p289
      %p291 = scmp.ne.s32.totalorder %s280, %s281
      %p292 = scmp.eq.s32.totalorder %s26, 0
      %p293 = por %p291, %p292
      %p294 = scmp.ne.s32.totalorder %s280, %s281
      %p295 = scmp.eq.s32.totalorder %s27, 3
      %p296 = por %p294, %p295
      %p298 = scmp.ne.s32.totalorder %s281, %s297
      %p299 = scmp.eq.s32.totalorder %s27, 0
      %p300 = por %p298, %p299
      %p301 = scmp.le.s32.totalorder 1, %s21
      %p302 = scmp.lt.s32.totalorder %s21, 5
      %p303 = pnand %p301, %p302
      %p304 = pneg %p303
      // Predicated region
      $region9: #{epic_layer_forward.1} parent=5 // pred_check
        _
      $region10: #{epic_layer_forward.1} parent=5 // pred_check_branch
        %306 = sbr.rel (%p303) target = $region12
      $region11: #{epic_layer_forward.1} parent=5 // pred_region
        %s307 = ssub.s32 %s21, 1
        // Predicated region
        $region13: #{epic_layer_forward.1} parent=11 // pred_check
          %p308 = pneg %p94
        $region14: #{epic_layer_forward.1} parent=11 // pred_check_branch
          %310 = sbr.rel (%p308) target = $region16
        $region15: #{epic_layer_forward.1} parent=11 // pred_region
          _
        $region16: #{epic_layer_forward.1} parent=11 // pred_fallthru
          _
        // Predicated region
        $region17: #{epic_layer_forward.1} parent=11 // pred_check
          %p311 = pneg %p115
        $region18: #{epic_layer_forward.1} parent=11 // pred_check_branch
          %313 = sbr.rel (%p311) target = $region20
        $region19: #{epic_layer_forward.1} parent=11 // pred_region
          _
        $region20: #{epic_layer_forward.1} parent=11 // pred_fallthru
          _
        // Predicated region
        $region21: #{epic_layer_forward.1} parent=11 // pred_check
          %p314 = pneg %p136
        $region22: #{epic_layer_forward.1} parent=11 // pred_check_branch
          %316 = sbr.rel (%p314) target = $region24
        $region23: #{epic_layer_forward.1} parent=11 // pred_region
          _
        $region24: #{epic_layer_forward.1} parent=11 // pred_fallthru
          _
        // Predicated region
        $region25: #{epic_layer_forward.1} parent=11 // pred_check
          %p317 = pneg %p157
        $region26: #{epic_layer_forward.1} parent=11 // pred_check_branch
          %319 = sbr.rel (%p317) target = $region28
        $region27: #{epic_layer_forward.1} parent=11 // pred_region
          _
        $region28: #{epic_layer_forward.1} parent=11 // pred_fallthru
          _
        // Predicated region
        $region29: #{epic_layer_forward.1} parent=11 // pred_check
          %p320 = pneg %p178
        $region30: #{epic_layer_forward.1} parent=11 // pred_check_branch
          %322 = sbr.rel (%p320) target = $region32
        $region31: #{epic_layer_forward.1} parent=11 // pred_region
          _
        $region32: #{epic_layer_forward.1} parent=11 // pred_fallthru
          _
        // Predicated region
        $region33: #{epic_layer_forward.1} parent=11 // pred_check
          %p323 = pneg %p199
        $region34: #{epic_layer_forward.1} parent=11 // pred_check_branch
          %325 = sbr.rel (%p323) target = $region36
        $region35: #{epic_layer_forward.1} parent=11 // pred_region
          _
        $region36: #{epic_layer_forward.1} parent=11 // pred_fallthru
          _
        // Predicated region
        $region37: #{epic_layer_forward.1} parent=11 // pred_check
          %p326 = pneg %p220
        $region38: #{epic_layer_forward.1} parent=11 // pred_check_branch
          %328 = sbr.rel (%p326) target = $region40
        $region39: #{epic_layer_forward.1} parent=11 // pred_region
          _
        $region40: #{epic_layer_forward.1} parent=11 // pred_fallthru
          _
        // Predicated region
        $region41: #{epic_layer_forward.1} parent=11 // pred_check
          %p329 = pneg %p241
        $region42: #{epic_layer_forward.1} parent=11 // pred_check_branch
          %331 = sbr.rel (%p329) target = $region44
        $region43: #{epic_layer_forward.1} parent=11 // pred_region
          _
        $region44: #{epic_layer_forward.1} parent=11 // pred_fallthru
          _
      $region12: #{epic_layer_forward.1} parent=5 // pred_fallthru
        _
      %p332 = scmp.lt.s32.totalorder %s21, 4
      // Predicated region
      $region45: #{epic_layer_forward.1} parent=5 // pred_check
        %p333 = pneg %p332
      $region46: #{epic_layer_forward.1} parent=5 // pred_check_branch
        %335 = sbr.rel (%p333) target = $region48
      $region47: #{epic_layer_forward.1} parent=5 // pred_region
        // Predicated region
        $region49: #{epic_layer_forward.1} parent=47 // pred_check
          %p336 = pneg %p41
        $region50: #{epic_layer_forward.1} parent=47 // pred_check_branch
          %338 = sbr.rel (%p336) target = $region52
        $region51: #{epic_layer_forward.1} parent=47 // pred_region
          %p339 = scmp.lt.s32.totalorder %s21, 3
          %s340 = scalar_select %p339, %s21, 3
          %s341 = scalar_lea.vmem %s0, %s340
        $region52: #{epic_layer_forward.1} parent=47 // pred_fallthru
          _
        // Predicated region
        $region53: #{epic_layer_forward.1} parent=47 // pred_check
          %p342 = pneg %p67
        $region54: #{epic_layer_forward.1} parent=47 // pred_check_branch
          %344 = sbr.rel (%p342) target = $region56
        $region55: #{epic_layer_forward.1} parent=47 // pred_region
          %p345 = scmp.lt.s32.totalorder %s21, 3
          %s346 = scalar_select %p345, %s21, 3
          %s347 = smul.addr %s346, 4
          %s348 = smul.addr %s347, 8
          %s349 = scalar_lea.vmem %s1, %s348
        $region56: #{epic_layer_forward.1} parent=47 // pred_fallthru
          _
      $region48: #{epic_layer_forward.1} parent=5 // pred_fallthru
        _
      %p350 = scmp.le.s32.totalorder 1, %s21
      %p351 = scmp.lt.s32.totalorder %s21, 5
      %p352 = pnand %p350, %p351
      %p353 = pneg %p352
      // Predicated region
      $region57: #{epic_layer_forward.1} parent=5 // pred_check
        _
      $region58: #{epic_layer_forward.1} parent=5 // pred_check_branch
        %355 = sbr.rel (%p352) target = $region60
      $region59: #{epic_layer_forward.1} parent=5 // pred_region
        %s356 = ssub.s32 %s21, 1
        %p357 = scmp.lt.s32.totalorder %s26, 3
        %s358 = scalar_select %p357, %s26, 3
        %s359 = scalar_lea.vmem %s0, %s358
        %p360 = pneg %p47
        %p361 = pneg %p44
        %p362 = scmp.lt.s32.totalorder %s26, 3
        %s363 = scalar_select %p362, %s26, 3
        %s364 = smul.addr %s363, 4
        %s365 = smul.addr %s364, 8
        %s366 = scalar_lea.vmem %s1, %s365
        %p367 = pneg %p73
        %p368 = pneg %p70
        %p369 = pneg %p94
        %p370 = pneg %p91
        %p371 = pneg %p115
        %p372 = pneg %p112
        %p373 = pneg %p136
        %p374 = pneg %p133
        %p375 = pneg %p157
        %p376 = pneg %p154
        %p377 = pneg %p178
        %p378 = pneg %p175
        %p379 = pneg %p199
        %p380 = pneg %p196
        %p381 = pneg %p220
        %p382 = pneg %p217
        %p383 = pneg %p241
        %p384 = pneg %p238
        %p385 = pneg %p267
        %p386 = pneg %p264
        %s387 = sand.u32 %s254, 1
        %s388 = scalar_lea.sflag [#allocation3], %s387
        %s389 = sand.u32 %s254, 1
        %s390 = scalar_lea.vmem [#allocation2], %s389
        %p391 = pneg %p293
        %p392 = pneg %p290
        %p393 = scmp.lt.s32.totalorder %s26, 3
        %s394 = scalar_select %p393, %s26, 3
        %s395 = smul.addr %s394, 4
        %s396 = smul.addr %s395, 8
        %s397 = scalar_lea.vmem %s11, %s396
        %p398 = scmp.lt.s32.totalorder %s26, 3
        %s399 = scalar_select %p398, %s26, 3
        %s400 = scalar_lea.vmem %s0, %s399
        %p401 = scmp.lt.s32.totalorder %s26, 3
        %s402 = scalar_select %p401, %s26, 3
        %s403 = smul.addr %s402, 4
        %s404 = smul.addr %s403, 8
        %s405 = scalar_lea.vmem %s1, %s404
        %p406 = scmp.lt.s32.totalorder %s26, 3
        %s407 = scalar_select %p406, %s26, 3
        %s408 = smul.addr %s407, 4
        %s409 = smul.addr %s408, 8
        %s410 = scalar_lea.vmem %s11, %s409
        %v411 = vld [vmem:[%s405] sm:$0xff]
        %v412 = vld [vmem:[%s405 + $0x8] sm:$0xff]
        %v413 = vld [vmem:[%s405 + $0x10] sm:$0xff]
        %v414 = vld [vmem:[%s405 + $0x18] sm:$0x3f]
        %v415 = vld [vmem:[%s400] sm:$0x1]
        %vm416 = vcmask 261120
        %v417 = vsel %vm416, %v411, 0.0
        %v418 = vsel %vm416, %v412, 0.0
        %v419 = vadd.f32 %v417, %v418
        %v420 = vsel %vm416, %v413, 0.0
        %v421 = vadd.f32 %v419, %v420
        %vm422 = vcmask 259072
        %v423 = vsel %vm422, %v414, 0.0
        %v424 = vadd.f32 %v421, %v423
        %v425 = vrot.slane %v424, 4
        %v426 = vadd.f32 %v424, %v425
        %v427 = vrot.slane %v426, 2
        %v428 = vadd.f32 %v426, %v427
        %v429 = vrot.slane %v428, 1
        %v430 = vadd.f32 %v428, %v429
        %v431 = vmul.f32 %v430, 0.033333335
        %v432 = vmul.f32 %v430, 0.01
        %v433 = vld [vmem:[%s2] sm:$0xff]
        %v434 = vld [vmem:[%s2 + $0x8] sm:$0xff]
        %v435 = vld [vmem:[%s2 + $0x10] sm:$0xff]
        %v436 = vld [vmem:[%s2 + $0x18] sm:$0xff]
        %v437 = vld [vmem:[%s2 + $0x20] sm:$0xff]
        %v438 = vld [vmem:[%s2 + $0x28] sm:$0xff]
        %v439 = vld [vmem:[%s2 + $0x30] sm:$0xff]
        %v440 = vld [vmem:[%s2 + $0x38] sm:$0xff]
        %v441 = vld [vmem:[%s2 + $0x40] sm:$0xff]
        %v442 = vld [vmem:[%s2 + $0x48] sm:$0xff]
        %v444 = vsel %vm416, %v432, 0
        %446 = vmatprep.subr.mxu0 0.0
        %447 = vmatpush1.msra.mxu0 %v437
        %448 = vmatprep.subr.mxu0 0.0
        %449 = vmatpush1.msra.mxu0 %v438
        %450 = vmatprep.subr.mxu0 0.0
        %451 = vmatpush1.msra.mxu0 %v439
        %452 = vmatprep.subr.mxu0 0.0
        %453 = vmatpush1.msra.mxu0 %v440
        %454 = vmatprep.subr.mxu0 0.0
        %455 = vmatpush1.msra.mxu0 0.0
        %456 = vmatprep.subr.mxu0 0.0
        %457 = vmatpush1.msra.mxu0 0.0
        %458 = vmatprep.subr.mxu0 0.0
        %459 = vmatpush1.msra.mxu0 0.0
        %460 = vmatprep.subr.mxu0 0.0
        %461 = vmatpush1.msra.mxu0 0.0
        %462 = vmatprep.subr.mxu0 0.0
        %463 = vmatpush1.msra.mxu0 0.0
        %464 = vmatprep.subr.mxu0 0.0
        %465 = vmatpush1.msra.mxu0 0.0
        %466 = vmatprep.subr.mxu0 0.0
        %467 = vmatpush1.msra.mxu0 0.0
        %468 = vmatprep.subr.mxu0 0.0
        %469 = vmatpush1.msra.mxu0 0.0
        %470 = vmatprep.subr.mxu0 0.0
        %471 = vmatpush1.msra.mxu0 0.0
        %472 = vmatprep.subr.mxu0 0.0
        %473 = vmatpush1.msra.mxu0 0.0
        %474 = vmatprep.subr.mxu0 0.0
        %475 = vmatpush1.msra.mxu0 0.0
        %476 = vmatprep.subr.mxu0 0.0
        %477 = vmatpush1.msra.mxu0 0.0
        %478 = vmatprep.subr.mxu0 0.0
        %479 = vmatpush1.msra.mxu0 0.0
        %480 = vmatprep.subr.mxu0 0.0
        %481 = vmatpush1.msra.mxu0 0.0
        %482 = vmatprep.subr.mxu0 0.0
        %483 = vmatpush1.msra.mxu0 0.0
        %484 = vmatprep.subr.mxu0 0.0
        %485 = vmatpush1.msra.mxu0 0.0
        %486 = vmatprep.subr.mxu0 0.0
        %487 = vmatpush1.msra.mxu0 0.0
        %488 = vmatprep.subr.mxu0 0.0
        %489 = vmatpush1.msra.mxu0 0.0
        %490 = vmatprep.subr.mxu0 0.0
        %491 = vmatpush1.msra.mxu0 0.0
        %492 = vmatprep.subr.mxu0 0.0
        %493 = vmatpush1.msra.mxu0 0.0
        %494 = vmatprep.subr.mxu0 0.0
        %495 = vmatpush1.msra.mxu0 0.0
        %496 = vmatprep.subr.mxu0 0.0
        %497 = vmatpush1.msra.mxu0 0.0
        %498 = vmatprep.subr.mxu0 0.0
        %499 = vmatpush1.msra.mxu0 0.0
        %500 = vmatprep.subr.mxu0 0.0
        %501 = vmatpush1.msra.mxu0 0.0
        %502 = vmatprep.subr.mxu0 0.0
        %503 = vmatpush1.msra.mxu0 0.0
        %504 = vmatprep.subr.mxu0 0.0
        %505 = vmatpush1.msra.mxu0 0.0
        %506 = vmatprep.subr.mxu0 0.0
        %507 = vmatpush1.msra.mxu0 0.0
        %508 = vmatprep.subr.mxu0 0.0
        %509 = vmatpush1.msra.mxu0 0.0
        %510 = vmatprep.mubr.f32.mxu0 0.0
        %511 = vmatmul.mubr.f32.gmra.mrb[0].mxu0 %v444
        %v512 = vpop.f32.mrb[0].mxu0
        %v513 = vadd.f32 0.0, %v512
        %v514 = vpop.f32.mrb[0].mxu0
        %515 = vdwg.mxu0
        %v517 = vsel %vm416, %v431, 0
        %519 = vmatprep.subr.mxu0 0.0
        %520 = vmatpush1.msra.mxu0 %v433
        %521 = vmatprep.subr.mxu0 0.0
        %522 = vmatpush1.msra.mxu0 %v434
        %523 = vmatprep.subr.mxu0 0.0
        %524 = vmatpush1.msra.mxu0 %v435
        %525 = vmatprep.subr.mxu0 0.0
        %526 = vmatpush1.msra.mxu0 %v436
        %527 = vmatprep.subr.mxu0 0.0
        %528 = vmatpush1.msra.mxu0 0.0
        %529 = vmatprep.subr.mxu0 0.0
        %530 = vmatpush1.msra.mxu0 0.0
        %531 = vmatprep.subr.mxu0 0.0
        %532 = vmatpush1.msra.mxu0 0.0
        %533 = vmatprep.subr.mxu0 0.0
        %534 = vmatpush1.msra.mxu0 0.0
        %535 = vmatprep.subr.mxu0 0.0
        %536 = vmatpush1.msra.mxu0 0.0
        %537 = vmatprep.subr.mxu0 0.0
        %538 = vmatpush1.msra.mxu0 0.0
        %539 = vmatprep.subr.mxu0 0.0
        %540 = vmatpush1.msra.mxu0 0.0
        %541 = vmatprep.subr.mxu0 0.0
        %542 = vmatpush1.msra.mxu0 0.0
        %543 = vmatprep.subr.mxu0 0.0
        %544 = vmatpush1.msra.mxu0 0.0
        %545 = vmatprep.subr.mxu0 0.0
        %546 = vmatpush1.msra.mxu0 0.0
        %547 = vmatprep.subr.mxu0 0.0
        %548 = vmatpush1.msra.mxu0 0.0
        %549 = vmatprep.subr.mxu0 0.0
        %550 = vmatpush1.msra.mxu0 0.0
        %551 = vmatprep.subr.mxu0 0.0
        %552 = vmatpush1.msra.mxu0 0.0
        %553 = vmatprep.subr.mxu0 0.0
        %554 = vmatpush1.msra.mxu0 0.0
        %555 = vmatprep.subr.mxu0 0.0
        %556 = vmatpush1.msra.mxu0 0.0
        %557 = vmatprep.subr.mxu0 0.0
        %558 = vmatpush1.msra.mxu0 0.0
        %559 = vmatprep.subr.mxu0 0.0
        %560 = vmatpush1.msra.mxu0 0.0
        %561 = vmatprep.subr.mxu0 0.0
        %562 = vmatpush1.msra.mxu0 0.0
        %563 = vmatprep.subr.mxu0 0.0
        %564 = vmatpush1.msra.mxu0 0.0
        %565 = vmatprep.subr.mxu0 0.0
        %566 = vmatpush1.msra.mxu0 0.0
        %567 = vmatprep.subr.mxu0 0.0
        %568 = vmatpush1.msra.mxu0 0.0
        %569 = vmatprep.subr.mxu0 0.0
        %570 = vmatpush1.msra.mxu0 0.0
        %571 = vmatprep.subr.mxu0 0.0
        %572 = vmatpush1.msra.mxu0 0.0
        %573 = vmatprep.subr.mxu0 0.0
        %574 = vmatpush1.msra.mxu0 0.0
        %575 = vmatprep.subr.mxu0 0.0
        %576 = vmatpush1.msra.mxu0 0.0
        %577 = vmatprep.subr.mxu0 0.0
        %578 = vmatpush1.msra.mxu0 0.0
        %579 = vmatprep.subr.mxu0 0.0
        %580 = vmatpush1.msra.mxu0 0.0
        %581 = vmatprep.subr.mxu0 0.0
        %582 = vmatpush1.msra.mxu0 0.0
        %583 = vmatprep.mubr.f32.mxu0 0.0
        %584 = vmatmul.mubr.f32.gmra.mrb[0].mxu0 %v517
        %v585 = vpop.f32.mrb[0].mxu0
        %v586 = vadd.f32 %v513, %v585
        %v587 = vpop.f32.mrb[0].mxu0
        %588 = vdwg.mxu0
        %vm589 = vcmask 130048
        %v591 = vsel %vm589, %v415, 0
        %593 = vmatprep.subr.mxu0 0.0
        %594 = vmatpush1.msra.mxu0 %v441
        %595 = vmatprep.subr.mxu0 0.0
        %596 = vmatpush1.msra.mxu0 %v442
        %597 = vmatprep.subr.mxu0 0.0
        %598 = vmatpush1.msra.mxu0 0.0
        %599 = vmatprep.subr.mxu0 0.0
        %600 = vmatpush1.msra.mxu0 0.0
        %601 = vmatprep.subr.mxu0 0.0
        %602 = vmatpush1.msra.mxu0 0.0
        %603 = vmatprep.subr.mxu0 0.0
        %604 = vmatpush1.msra.mxu0 0.0
        %605 = vmatprep.subr.mxu0 0.0
        %606 = vmatpush1.msra.mxu0 0.0
        %607 = vmatprep.subr.mxu0 0.0
        %608 = vmatpush1.msra.mxu0 0.0
        %609 = vmatprep.subr.mxu0 0.0
        %610 = vmatpush1.msra.mxu0 0.0
        %611 = vmatprep.subr.mxu0 0.0
        %612 = vmatpush1.msra.mxu0 0.0
        %613 = vmatprep.subr.mxu0 0.0
        %614 = vmatpush1.msra.mxu0 0.0
        %615 = vmatprep.subr.mxu0 0.0
        %616 = vmatpush1.msra.mxu0 0.0
        %617 = vmatprep.subr.mxu0 0.0
        %618 = vmatpush1.msra.mxu0 0.0
        %619 = vmatprep.subr.mxu0 0.0
        %620 = vmatpush1.msra.mxu0 0.0
        %621 = vmatprep.subr.mxu0 0.0
        %622 = vmatpush1.msra.mxu0 0.0
        %623 = vmatprep.subr.mxu0 0.0
        %624 = vmatpush1.msra.mxu0 0.0
        %625 = vmatprep.subr.mxu0 0.0
        %626 = vmatpush1.msra.mxu0 0.0
        %627 = vmatprep.subr.mxu0 0.0
        %628 = vmatpush1.msra.mxu0 0.0
        %629 = vmatprep.subr.mxu0 0.0
        %630 = vmatpush1.msra.mxu0 0.0
        %631 = vmatprep.subr.mxu0 0.0
        %632 = vmatpush1.msra.mxu0 0.0
        %633 = vmatprep.subr.mxu0 0.0
        %634 = vmatpush1.msra.mxu0 0.0
        %635 = vmatprep.subr.mxu0 0.0
        %636 = vmatpush1.msra.mxu0 0.0
        %637 = vmatprep.subr.mxu0 0.0
        %638 = vmatpush1.msra.mxu0 0.0
        %639 = vmatprep.subr.mxu0 0.0
        %640 = vmatpush1.msra.mxu0 0.0
        %641 = vmatprep.subr.mxu0 0.0
        %642 = vmatpush1.msra.mxu0 0.0
        %643 = vmatprep.subr.mxu0 0.0
        %644 = vmatpush1.msra.mxu0 0.0
        %645 = vmatprep.subr.mxu0 0.0
        %646 = vmatpush1.msra.mxu0 0.0
        %647 = vmatprep.subr.mxu0 0.0
        %648 = vmatpush1.msra.mxu0 0.0
        %649 = vmatprep.subr.mxu0 0.0
        %650 = vmatpush1.msra.mxu0 0.0
        %651 = vmatprep.subr.mxu0 0.0
        %652 = vmatpush1.msra.mxu0 0.0
        %653 = vmatprep.subr.mxu0 0.0
        %654 = vmatpush1.msra.mxu0 0.0
        %655 = vmatprep.subr.mxu0 0.0
        %656 = vmatpush1.msra.mxu0 0.0
        %657 = vmatprep.mubr.f32.mxu0 0.0
        %658 = vmatmul.mubr.f32.gmra.mrb[0].mxu0 %v591
        %v659 = vpop.f32.mrb[0].mxu0
        %v660 = vadd.f32 0.0, %v659
        %v661 = vpop.f32.mrb[0].mxu0
        %662 = vdwg.mxu0
        %v663 = vadd.f32 %v586, %v660
        %v664 = vld [vmem:[%s3] sm:$0x1]
        %v665 = vadd.f32 %v663, %v664
        %vm666 = vcmp.gt.f32.partialorder %v665, 0.0
        %v667 = vmul.f32 %v665, 0.01
        %v668 = vsel %vm666, %v665, %v667
        %v669 = vld [vmem:[%s4] sm:$0xff]
        %v670 = vld [vmem:[%s4 + $0x8] sm:$0xff]
        %v671 = vld [vmem:[%s4 + $0x10] sm:$0xff]
        %v672 = vld [vmem:[%s4 + $0x18] sm:$0xff]
        %v673 = vld [vmem:[%s5] sm:$0x1]
        %v675 = vsel %vm416, %v668, 0
        %677 = vmatprep.subr.mxu0 0.0
        %678 = vmatpush1.msra.mxu0 %v669
        %679 = vmatprep.subr.mxu0 0.0
        %680 = vmatpush1.msra.mxu0 %v670
        %681 = vmatprep.subr.mxu0 0.0
        %682 = vmatpush1.msra.mxu0 %v671
        %683 = vmatprep.subr.mxu0 0.0
        %684 = vmatpush1.msra.mxu0 %v672
        %685 = vmatprep.subr.mxu0 0.0
        %686 = vmatpush1.msra.mxu0 0.0
        %687 = vmatprep.subr.mxu0 0.0
        %688 = vmatpush1.msra.mxu0 0.0
        %689 = vmatprep.subr.mxu0 0.0
        %690 = vmatpush1.msra.mxu0 0.0
        %691 = vmatprep.subr.mxu0 0.0
        %692 = vmatpush1.msra.mxu0 0.0
        %693 = vmatprep.subr.mxu0 0.0
        %694 = vmatpush1.msra.mxu0 0.0
        %695 = vmatprep.subr.mxu0 0.0
        %696 = vmatpush1.msra.mxu0 0.0
        %697 = vmatprep.subr.mxu0 0.0
        %698 = vmatpush1.msra.mxu0 0.0
        %699 = vmatprep.subr.mxu0 0.0
        %700 = vmatpush1.msra.mxu0 0.0
        %701 = vmatprep.subr.mxu0 0.0
        %702 = vmatpush1.msra.mxu0 0.0
        %703 = vmatprep.subr.mxu0 0.0
        %704 = vmatpush1.msra.mxu0 0.0
        %705 = vmatprep.subr.mxu0 0.0
        %706 = vmatpush1.msra.mxu0 0.0
        %707 = vmatprep.subr.mxu0 0.0
        %708 = vmatpush1.msra.mxu0 0.0
        %709 = vmatprep.subr.mxu0 0.0
        %710 = vmatpush1.msra.mxu0 0.0
        %711 = vmatprep.subr.mxu0 0.0
        %712 = vmatpush1.msra.mxu0 0.0
        %713 = vmatprep.subr.mxu0 0.0
        %714 = vmatpush1.msra.mxu0 0.0
        %715 = vmatprep.subr.mxu0 0.0
        %716 = vmatpush1.msra.mxu0 0.0
        %717 = vmatprep.subr.mxu0 0.0
        %718 = vmatpush1.msra.mxu0 0.0
        %719 = vmatprep.subr.mxu0 0.0
        %720 = vmatpush1.msra.mxu0 0.0
        %721 = vmatprep.subr.mxu0 0.0
        %722 = vmatpush1.msra.mxu0 0.0
        %723 = vmatprep.subr.mxu0 0.0
        %724 = vmatpush1.msra.mxu0 0.0
        %725 = vmatprep.subr.mxu0 0.0
        %726 = vmatpush1.msra.mxu0 0.0
        %727 = vmatprep.subr.mxu0 0.0
        %728 = vmatpush1.msra.mxu0 0.0
        %729 = vmatprep.subr.mxu0 0.0
        %730 = vmatpush1.msra.mxu0 0.0
        %731 = vmatprep.subr.mxu0 0.0
        %732 = vmatpush1.msra.mxu0 0.0
        %733 = vmatprep.subr.mxu0 0.0
        %734 = vmatpush1.msra.mxu0 0.0
        %735 = vmatprep.subr.mxu0 0.0
        %736 = vmatpush1.msra.mxu0 0.0
        %737 = vmatprep.subr.mxu0 0.0
        %738 = vmatpush1.msra.mxu0 0.0
        %739 = vmatprep.subr.mxu0 0.0
        %740 = vmatpush1.msra.mxu0 0.0
        %741 = vmatprep.mubr.f32.mxu0 0.0
        %742 = vmatmul.mubr.f32.gmra.mrb[0].mxu0 %v675
        %v743 = vpop.f32.mrb[0].mxu0
        %v744 = vadd.f32 %v673, %v743
        %v745 = vpop.f32.mrb[0].mxu0
        %746 = vdwg.mxu0
        %v747 = vadd.f32 %v744, %v415
        %vm748 = vcmp.gt.f32.partialorder %v747, 0.0
        %v749 = vmul.f32 %v747, 0.01
        %v750 = vsel %vm748, %v747, %v749
        %vm751 = vcmask 122880
        %752 = vst.msk [vmem:[%s390] sm:$0x1] %vm751, %v750
        %v753 = vld [vmem:[%s6] sm:$0xff]
        %v754 = vld [vmem:[%s6 + $0x8] sm:$0xff]
        %v755 = vld [vmem:[%s6 + $0x10] sm:$0xff]
        %v756 = vld [vmem:[%s6 + $0x18] sm:$0xff]
        %v757 = vld [vmem:[%s6 + $0x20] sm:$0xff]
        %v758 = vld [vmem:[%s6 + $0x28] sm:$0xff]
        %v760 = vsel %vm589, %v750, 0
        %762 = vmatprep.subr.mxu0 0.0
        %763 = vmatpush1.msra.mxu0 %v757
        %764 = vmatprep.subr.mxu0 0.0
        %765 = vmatpush1.msra.mxu0 %v758
        %766 = vmatprep.subr.mxu0 0.0
        %767 = vmatpush1.msra.mxu0 0.0
        %768 = vmatprep.subr.mxu0 0.0
        %769 = vmatpush1.msra.mxu0 0.0
        %770 = vmatprep.subr.mxu0 0.0
        %771 = vmatpush1.msra.mxu0 0.0
        %772 = vmatprep.subr.mxu0 0.0
        %773 = vmatpush1.msra.mxu0 0.0
        %774 = vmatprep.subr.mxu0 0.0
        %775 = vmatpush1.msra.mxu0 0.0
        %776 = vmatprep.subr.mxu0 0.0
        %777 = vmatpush1.msra.mxu0 0.0
        %778 = vmatprep.subr.mxu0 0.0
        %779 = vmatpush1.msra.mxu0 0.0
        %780 = vmatprep.subr.mxu0 0.0
        %781 = vmatpush1.msra.mxu0 0.0
        %782 = vmatprep.subr.mxu0 0.0
        %783 = vmatpush1.msra.mxu0 0.0
        %784 = vmatprep.subr.mxu0 0.0
        %785 = vmatpush1.msra.mxu0 0.0
        %786 = vmatprep.subr.mxu0 0.0
        %787 = vmatpush1.msra.mxu0 0.0
        %788 = vmatprep.subr.mxu0 0.0
        %789 = vmatpush1.msra.mxu0 0.0
        %790 = vmatprep.subr.mxu0 0.0
        %791 = vmatpush1.msra.mxu0 0.0
        %792 = vmatprep.subr.mxu0 0.0
        %793 = vmatpush1.msra.mxu0 0.0
        %794 = vmatprep.subr.mxu0 0.0
        %795 = vmatpush1.msra.mxu0 0.0
        %796 = vmatprep.subr.mxu0 0.0
        %797 = vmatpush1.msra.mxu0 0.0
        %798 = vmatprep.subr.mxu0 0.0
        %799 = vmatpush1.msra.mxu0 0.0
        %800 = vmatprep.subr.mxu0 0.0
        %801 = vmatpush1.msra.mxu0 0.0
        %802 = vmatprep.subr.mxu0 0.0
        %803 = vmatpush1.msra.mxu0 0.0
        %804 = vmatprep.subr.mxu0 0.0
        %805 = vmatpush1.msra.mxu0 0.0
        %806 = vmatprep.subr.mxu0 0.0
        %807 = vmatpush1.msra.mxu0 0.0
        %808 = vmatprep.subr.mxu0 0.0
        %809 = vmatpush1.msra.mxu0 0.0
        %810 = vmatprep.subr.mxu0 0.0
        %811 = vmatpush1.msra.mxu0 0.0
        %812 = vmatprep.subr.mxu0 0.0
        %813 = vmatpush1.msra.mxu0 0.0
        %814 = vmatprep.subr.mxu0 0.0
        %815 = vmatpush1.msra.mxu0 0.0
        %816 = vmatprep.subr.mxu0 0.0
        %817 = vmatpush1.msra.mxu0 0.0
        %818 = vmatprep.subr.mxu0 0.0
        %819 = vmatpush1.msra.mxu0 0.0
        %820 = vmatprep.subr.mxu0 0.0
        %821 = vmatpush1.msra.mxu0 0.0
        %822 = vmatprep.subr.mxu0 0.0
        %823 = vmatpush1.msra.mxu0 0.0
        %824 = vmatprep.subr.mxu0 0.0
        %825 = vmatpush1.msra.mxu0 0.0
        %826 = vmatprep.mubr.f32.mxu0 0.0
        %827 = vmatmul.mubr.f32.gmra.mrb[0].mxu0 %v760
        %v828 = vpop.f32.mrb[0].mxu0
        %v829 = vadd.f32 0.0, %v828
        %v830 = vpop.f32.mrb[0].mxu0
        %831 = vdwg.mxu0
        %v832 = vlaneseq
        %v833 = vshrl.u32 %v832, 7
        %v834 = vsub.s32 0, %v833
        %v835 = vrot.slane %v829, %v834
        %v837 = vsel %vm416, %v411, 0
        %v840 = vsel %vm416, %v412, 0
        %v843 = vsel %vm416, %v413, 0
        %v846 = vsel %vm416, %v414, 0
        %848 = vmatprep.subr.mxu0 0.0
        %849 = vmatpush1.msra.mxu0 %v753
        %850 = vmatprep.subr.mxu0 0.0
        %851 = vmatpush1.msra.mxu0 %v754
        %852 = vmatprep.subr.mxu0 0.0
        %853 = vmatpush1.msra.mxu0 %v755
        %854 = vmatprep.subr.mxu0 0.0
        %855 = vmatpush1.msra.mxu0 %v756
        %856 = vmatprep.subr.mxu0 0.0
        %857 = vmatpush1.msra.mxu0 0.0
        %858 = vmatprep.subr.mxu0 0.0
        %859 = vmatpush1.msra.mxu0 0.0
        %860 = vmatprep.subr.mxu0 0.0
        %861 = vmatpush1.msra.mxu0 0.0
        %862 = vmatprep.subr.mxu0 0.0
        %863 = vmatpush1.msra.mxu0 0.0
        %864 = vmatprep.subr.mxu0 0.0
        %865 = vmatpush1.msra.mxu0 0.0
        %866 = vmatprep.subr.mxu0 0.0
        %867 = vmatpush1.msra.mxu0 0.0
        %868 = vmatprep.subr.mxu0 0.0
        %869 = vmatpush1.msra.mxu0 0.0
        %870 = vmatprep.subr.mxu0 0.0
        %871 = vmatpush1.msra.mxu0 0.0
        %872 = vmatprep.subr.mxu0 0.0
        %873 = vmatpush1.msra.mxu0 0.0
        %874 = vmatprep.subr.mxu0 0.0
        %875 = vmatpush1.msra.mxu0 0.0
        %876 = vmatprep.subr.mxu0 0.0
        %877 = vmatpush1.msra.mxu0 0.0
        %878 = vmatprep.subr.mxu0 0.0
        %879 = vmatpush1.msra.mxu0 0.0
        %880 = vmatprep.subr.mxu0 0.0
        %881 = vmatpush1.msra.mxu0 0.0
        %882 = vmatprep.subr.mxu0 0.0
        %883 = vmatpush1.msra.mxu0 0.0
        %884 = vmatprep.subr.mxu0 0.0
        %885 = vmatpush1.msra.mxu0 0.0
        %886 = vmatprep.subr.mxu0 0.0
        %887 = vmatpush1.msra.mxu0 0.0
        %888 = vmatprep.subr.mxu0 0.0
        %889 = vmatpush1.msra.mxu0 0.0
        %890 = vmatprep.subr.mxu0 0.0
        %891 = vmatpush1.msra.mxu0 0.0
        %892 = vmatprep.subr.mxu0 0.0
        %893 = vmatpush1.msra.mxu0 0.0
        %894 = vmatprep.subr.mxu0 0.0
        %895 = vmatpush1.msra.mxu0 0.0
        %896 = vmatprep.subr.mxu0 0.0
        %897 = vmatpush1.msra.mxu0 0.0
        %898 = vmatprep.subr.mxu0 0.0
        %899 = vmatpush1.msra.mxu0 0.0
        %900 = vmatprep.subr.mxu0 0.0
        %901 = vmatpush1.msra.mxu0 0.0
        %902 = vmatprep.subr.mxu0 0.0
        %903 = vmatpush1.msra.mxu0 0.0
        %904 = vmatprep.subr.mxu0 0.0
        %905 = vmatpush1.msra.mxu0 0.0
        %906 = vmatprep.subr.mxu0 0.0
        %907 = vmatpush1.msra.mxu0 0.0
        %908 = vmatprep.subr.mxu0 0.0
        %909 = vmatpush1.msra.mxu0 0.0
        %910 = vmatprep.subr.mxu0 0.0
        %911 = vmatpush1.msra.mxu0 0.0
        %912 = vmatprep.mubr.f32.mxu0 0.0
        %913 = vmatmul.mubr.f32.gmra.mrb[0].mxu0 %v837
        %v914 = vpop.f32.mrb[0].mxu0
        %v915 = vadd.f32 %v835, %v914
        %v916 = vpop.f32.mrb[0].mxu0
        %917 = vmatprep.mubr.f32.mxu0 0.0
        %918 = vmatmul.mubr.f32.gmra.mrb[0].mxu0 %v840
        %v919 = vpop.f32.mrb[0].mxu0
        %v920 = vadd.f32 %v835, %v919
        %v921 = vpop.f32.mrb[0].mxu0
        %922 = vmatprep.mubr.f32.mxu0 0.0
        %923 = vmatmul.mubr.f32.gmra.mrb[0].mxu0 %v843
        %v924 = vpop.f32.mrb[0].mxu0
        %v925 = vadd.f32 %v835, %v924
        %v926 = vpop.f32.mrb[0].mxu0
        %927 = vmatprep.mubr.f32.mxu0 0.0
        %928 = vmatmul.mubr.f32.gmra.mrb[0].mxu0 %v846
        %v929 = vpop.f32.mrb[0].mxu0
        %v930 = vadd.f32 %v835, %v929
        %v931 = vpop.f32.mrb[0].mxu0
        %932 = vdwg.mxu0
        %v933 = vld [vmem:[%s7] sm:$0x1]
        %v935 = vlaneseq
        %v936 = vshrl.u32 %v935, 7
        %v937 = vsub.s32 0, %v936
        %v938 = vrot.slane %v933, %v937
        %v940 = vadd.f32 %v915, %v938
        %v941 = vadd.f32 %v920, %v938
        %v942 = vadd.f32 %v925, %v938
        %v943 = vadd.f32 %v930, %v938
        %vm944 = vcmp.gt.f32.partialorder %v940, 0.0
        %vm945 = vcmp.gt.f32.partialorder %v941, 0.0
        %vm946 = vcmp.gt.f32.partialorder %v942, 0.0
        %vm947 = vcmp.gt.f32.partialorder %v943, 0.0
        %v948 = vmul.f32 %v940, 0.01
        %v949 = vmul.f32 %v941, 0.01
        %v950 = vmul.f32 %v942, 0.01
        %v951 = vmul.f32 %v943, 0.01
        %v952 = vsel %vm944, %v940, %v948
        %v953 = vsel %vm945, %v941, %v949
        %v954 = vsel %vm946, %v942, %v950
        %v955 = vsel %vm947, %v943, %v951
        %v956 = vld [vmem:[%s8] sm:$0xff]
        %v957 = vld [vmem:[%s8 + $0x8] sm:$0xff]
        %v958 = vld [vmem:[%s8 + $0x10] sm:$0xff]
        %v959 = vld [vmem:[%s8 + $0x18] sm:$0xff]
        %v960 = vld [vmem:[%s9] sm:$0x1]
        %v962 = vlaneseq
        %v963 = vshrl.u32 %v962, 7
        %v964 = vsub.s32 0, %v963
        %v965 = vrot.slane %v960, %v964
        %v968 = vsel %vm416, %v952, 0
        %v971 = vsel %vm416, %v953, 0
        %v974 = vsel %vm416, %v954, 0
        %v977 = vsel %vm416, %v955, 0
        %979 = vmatprep.subr.mxu0 0.0
        %980 = vmatpush1.msra.mxu0 %v956
        %981 = vmatprep.subr.mxu0 0.0
        %982 = vmatpush1.msra.mxu0 %v957
        %983 = vmatprep.subr.mxu0 0.0
        %984 = vmatpush1.msra.mxu0 %v958
        %985 = vmatprep.subr.mxu0 0.0
        %986 = vmatpush1.msra.mxu0 %v959
        %987 = vmatprep.subr.mxu0 0.0
        %988 = vmatpush1.msra.mxu0 0.0
        %989 = vmatprep.subr.mxu0 0.0
        %990 = vmatpush1.msra.mxu0 0.0
        %991 = vmatprep.subr.mxu0 0.0
        %992 = vmatpush1.msra.mxu0 0.0
        %993 = vmatprep.subr.mxu0 0.0
        %994 = vmatpush1.msra.mxu0 0.0
        %995 = vmatprep.subr.mxu0 0.0
        %996 = vmatpush1.msra.mxu0 0.0
        %997 = vmatprep.subr.mxu0 0.0
        %998 = vmatpush1.msra.mxu0 0.0
        %999 = vmatprep.subr.mxu0 0.0
        %1000 = vmatpush1.msra.mxu0 0.0
        %1001 = vmatprep.subr.mxu0 0.0
        %1002 = vmatpush1.msra.mxu0 0.0
        %1003 = vmatprep.subr.mxu0 0.0
        %1004 = vmatpush1.msra.mxu0 0.0
        %1005 = vmatprep.subr.mxu0 0.0
        %1006 = vmatpush1.msra.mxu0 0.0
        %1007 = vmatprep.subr.mxu0 0.0
        %1008 = vmatpush1.msra.mxu0 0.0
        %1009 = vmatprep.subr.mxu0 0.0
        %1010 = vmatpush1.msra.mxu0 0.0
        %1011 = vmatprep.subr.mxu0 0.0
        %1012 = vmatpush1.msra.mxu0 0.0
        %1013 = vmatprep.subr.mxu0 0.0
        %1014 = vmatpush1.msra.mxu0 0.0
        %1015 = vmatprep.subr.mxu0 0.0
        %1016 = vmatpush1.msra.mxu0 0.0
        %1017 = vmatprep.subr.mxu0 0.0
        %1018 = vmatpush1.msra.mxu0 0.0
        %1019 = vmatprep.subr.mxu0 0.0
        %1020 = vmatpush1.msra.mxu0 0.0
        %1021 = vmatprep.subr.mxu0 0.0
        %1022 = vmatpush1.msra.mxu0 0.0
        %1023 = vmatprep.subr.mxu0 0.0
        %1024 = vmatpush1.msra.mxu0 0.0
        %1025 = vmatprep.subr.mxu0 0.0
        %1026 = vmatpush1.msra.mxu0 0.0
        %1027 = vmatprep.subr.mxu0 0.0
        %1028 = vmatpush1.msra.mxu0 0.0
        %1029 = vmatprep.subr.mxu0 0.0
        %1030 = vmatpush1.msra.mxu0 0.0
        %1031 = vmatprep.subr.mxu0 0.0
        %1032 = vmatpush1.msra.mxu0 0.0
        %1033 = vmatprep.subr.mxu0 0.0
        %1034 = vmatpush1.msra.mxu0 0.0
        %1035 = vmatprep.subr.mxu0 0.0
        %1036 = vmatpush1.msra.mxu0 0.0
        %1037 = vmatprep.subr.mxu0 0.0
        %1038 = vmatpush1.msra.mxu0 0.0
        %1039 = vmatprep.subr.mxu0 0.0
        %1040 = vmatpush1.msra.mxu0 0.0
        %1041 = vmatprep.subr.mxu0 0.0
        %1042 = vmatpush1.msra.mxu0 0.0
        %1043 = vmatprep.mubr.f32.mxu0 0.0
        %1044 = vmatmul.mubr.f32.gmra.mrb[0].mxu0 %v968
        %v1045 = vpop.f32.mrb[0].mxu0
        %v1046 = vadd.f32 %v965, %v1045
        %v1047 = vpop.f32.mrb[0].mxu0
        %1048 = vmatprep.mubr.f32.mxu0 0.0
        %1049 = vmatmul.mubr.f32.gmra.mrb[0].mxu0 %v971
        %v1050 = vpop.f32.mrb[0].mxu0
        %v1051 = vadd.f32 %v965, %v1050
        %v1052 = vpop.f32.mrb[0].mxu0
        %1053 = vmatprep.mubr.f32.mxu0 0.0
        %1054 = vmatmul.mubr.f32.gmra.mrb[0].mxu0 %v974
        %v1055 = vpop.f32.mrb[0].mxu0
        %v1056 = vadd.f32 %v965, %v1055
        %v1057 = vpop.f32.mrb[0].mxu0
        %1058 = vmatprep.mubr.f32.mxu0 0.0
        %1059 = vmatmul.mubr.f32.gmra.mrb[0].mxu0 %v977
        %v1060 = vpop.f32.mrb[0].mxu0
        %v1061 = vadd.f32 %v965, %v1060
        %v1062 = vpop.f32.mrb[0].mxu0
        %1063 = vdwg.mxu0
        %v1064 = vadd.f32 %v1046, %v411
        %v1065 = vadd.f32 %v1051, %v412
        %v1066 = vadd.f32 %v1056, %v413
        %v1067 = vadd.f32 %v1061, %v414
        %vm1068 = vcmp.gt.f32.partialorder %v1064, 0.0
        %vm1069 = vcmp.gt.f32.partialorder %v1065, 0.0
        %vm1070 = vcmp.gt.f32.partialorder %v1066, 0.0
        %vm1071 = vcmp.gt.f32.partialorder %v1067, 0.0
        %v1072 = vmul.f32 %v1064, 0.01
        %v1073 = vmul.f32 %v1065, 0.01
        %v1074 = vmul.f32 %v1066, 0.01
        %v1075 = vmul.f32 %v1067, 0.01
        %v1076 = vsel %vm1068, %v1064, %v1072
        %v1077 = vsel %vm1069, %v1065, %v1073
        %v1078 = vsel %vm1070, %v1066, %v1074
        %v1079 = vsel %vm1071, %v1067, %v1075
        %1080 = vst.msk [vmem:[%s410] sm:$0xff] %vm416, %v1076
        %1081 = vst.msk [vmem:[%s410 + $0x8] sm:$0xff] %vm416, %v1077
        %1082 = vst.msk [vmem:[%s410 + $0x10] sm:$0xff] %vm416, %v1078
        %1083 = vst.msk [vmem:[%s410 + $0x18] sm:$0x3f] %vm422, %v1079
        %s1084 = sand.u32 %s254, 1
        %s1085 = scalar_lea.sflag [#allocation3], %s1084
        %s1086 = sand.u32 %s254, 1
        %s1087 = scalar_lea.vmem [#allocation2], %s1086
        %p1088 = scmp.lt.s32.totalorder %s26, 3
        %s1089 = scalar_select %p1088, %s26, 3
        %s1090 = smul.addr %s1089, 4
        %s1091 = smul.addr %s1090, 8
        %s1092 = scalar_lea.vmem %s11, %s1091
        // Predicated region
        $region61: #{epic_layer_forward.1} parent=59 // pred_check
          %p1093 = pneg %p264
        $region62: #{epic_layer_forward.1} parent=59 // pred_check_branch
          %1095 = sbr.rel (%p1093) target = $region64
        $region63: #{epic_layer_forward.1} parent=59 // pred_region
          %s1097 = ssub.s32 16, 16
          %1098 = vsyncadd %s1085, %s1097
          %s1099 = smul.addr %s26, 16
          %s1100 = scalar_lea.hbm %s10, %s1099
          %s1102 = sshll.u32 %s1087, 4
          %s1103 = int_to_ptr.vmem [resolvable:$true] %s1102
          %1105 = dma.vmem_to_hbm [thread:$0]  %s1103, 16, %s1100, %s1085
        $region64: #{epic_layer_forward.1} parent=59 // pred_fallthru
          _
        // Predicated region
        $region65: #{epic_layer_forward.1} parent=59 // pred_check
          %p1106 = pneg %p290
        $region66: #{epic_layer_forward.1} parent=59 // pred_check_branch
          %1108 = sbr.rel (%p1106) target = $region68
        $region67: #{epic_layer_forward.1} parent=59 // pred_region
          _
        $region68: #{epic_layer_forward.1} parent=59 // pred_fallthru
          _
      $region60: #{epic_layer_forward.1} parent=5 // pred_fallthru
        _
      %p1109 = scmp.le.s32.totalorder 2, %s21
      // Predicated region
      $region69: #{epic_layer_forward.1} parent=5 // pred_check
        %p1110 = pneg %p1109
      $region70: #{epic_layer_forward.1} parent=5 // pred_check_branch
        %1112 = sbr.rel (%p1110) target = $region72
      $region71: #{epic_layer_forward.1} parent=5 // pred_region
        %s1113 = ssub.s32 %s21, 2
        // Predicated region
        $region73: #{epic_layer_forward.1} parent=71 // pred_check
          %p1114 = pneg %p270
        $region74: #{epic_layer_forward.1} parent=71 // pred_check_branch
          %1116 = sbr.rel (%p1114) target = $region76
        $region75: #{epic_layer_forward.1} parent=71 // pred_region
          %s1117 = sand.u32 %s255, 1
          %s1118 = scalar_lea.sflag [#allocation3], %s1117
          %s1119 = sand.u32 %s255, 1
          %s1120 = scalar_lea.vmem [#allocation2], %s1119
          %1121 = dma.done %s1118, 16
        $region76: #{epic_layer_forward.1} parent=71 // pred_fallthru
          _
        // Predicated region
        $region77: #{epic_layer_forward.1} parent=71 // pred_check
          %p1122 = pneg %p296
        $region78: #{epic_layer_forward.1} parent=71 // pred_check_branch
          %1124 = sbr.rel (%p1122) target = $region80
        $region79: #{epic_layer_forward.1} parent=71 // pred_region
          %p1125 = scmp.lt.s32.totalorder %s27, 3
          %s1126 = scalar_select %p1125, %s27, 3
          %s1127 = smul.addr %s1126, 4
          %s1128 = smul.addr %s1127, 8
          %s1129 = scalar_lea.vmem %s11, %s1128
        $region80: #{epic_layer_forward.1} parent=71 // pred_fallthru
          _
      $region72: #{epic_layer_forward.1} parent=5 // pred_fallthru
        _
    $region6: #{epic_layer_forward.1} parent=1 // loop_footer
      %s25 = sadd.s32 1, %s21
    $region7: #{epic_layer_forward.1} parent=1 // loop_footer_branch
      %20 = sbr.rel target = $region3
    $region8: #{epic_layer_forward.1} parent=1 // loop_exit
      _
    %1130 = vsyncpa [#allocation3], 1
    %s1131 = scalar_lea.sflag [#allocation3], 1
    %1132 = vsyncpa %s1131, 1

</llo_original>
